<compile_context>
chip_gen: v5e
topology: v5e:2x2
jax: 0.10.0
libtpu: 0.0.40
codegen_flags: <defaults>
</compile_context>

<pallas_src>
import functools
import math

import jax
import jax.numpy as jnp
from jax.experimental import pallas as pl
from jax.experimental.pallas import tpu as pltpu


def _temporal_kernel(x_ref, table_ref, o_ref, *, field_offsets, k_pad):
    """One (tile_rows, d_pad) tile of the summed temporal embedding.

    x_ref:     (tile_rows, C)      f32  raw time features (int-valued)
    table_ref: (k_pad, d_pad)      f32  concatenated fixed embedding tables
    o_ref:     (tile_rows, d_pad)  f32
    """
    idx = x_ref[...].astype(jnp.int32)            # x.long() truncation, in-kernel
    t = idx.shape[0]

    # Multi-hot row selector over the concatenated table.  Each field occupies
    # a disjoint row range [offset_f, offset_f + size_f), so OR of the per-field
    # one-hots is exactly the multi-hot gather mask.  Pure VPU work.
    lanes = jax.lax.broadcasted_iota(jnp.int32, (t, k_pad), 1)
    hot = lanes == (idx[:, 0:1] + field_offsets[0])
    for f in range(1, len(field_offsets)):        # static unroll (4 or 5 fields)
        hot = hot | (lanes == (idx[:, f : f + 1] + field_offsets[f]))
    multihot = hot.astype(jnp.float32)            # (T, 128)

    # Single MXU matmul replaces the gather + field-sum.  Keep full f32
    # precision (HIGHEST) so the 1e-4 accuracy contract holds.
    o_ref[...] = jnp.dot(
        multihot,
        table_ref[...],
        preferred_element_type=jnp.float32,
        precision=jax.lax.Precision.HIGHEST,
    )


def _pick_tile(n_rows):
    """Row tile (multiple of 8): single step for tiny inputs, otherwise
    512-1024 rows/tile with >=4 grid steps so both v7x cores keep their
    pipelines full.  VMEM is never the binding resource here."""
    rows8 = max(8, -(-n_rows // 8) * 8)
    if rows8 <= 512:
        return rows8
    tile = max(512, min(1024, rows8 // 4))
    return -(-tile // 8) * 8


def _fixed_table(c_in, d_model):
    """FixedEmbedding weight: even cols sin, odd cols cos (PyTorch spec)."""
    position = jnp.arange(c_in, dtype=jnp.float32)[:, None]
    div_term = jnp.exp(
        jnp.arange(0, d_model, 2, dtype=jnp.float32)
        * jnp.float32(-(math.log(10000.0) / d_model))
    )
    w = jnp.zeros((c_in, d_model), jnp.float32)
    w = w.at[:, 0::2].set(jnp.sin(position * div_term))
    w = w.at[:, 1::2].set(jnp.cos(position * div_term))
    return w


def temporal_embedding(x, d_model, embed_type="fixed", freq="h"):
    """Equivalent of TemporalEmbedding.forward(x).

    x: (B, L, C) integer-valued time features, columns
       [month, day, weekday, hour, (minute)].  Returns (B, L, d_model) f32.
    """
    # TODO(synk): embed_type != 'fixed' (learned nn.Embedding tables) not implemented.
    assert embed_type == "fixed"
    B, L, C = x.shape
    n_fields = 5 if freq == "t" else 4
    assert C >= n_fields

    # Concatenated fixed tables; field order matches x columns.
    sizes = [13, 32, 7, 24] + ([4] if freq == "t" else [])   # month, day, weekday, hour, minute
    offsets, off = [], 0
    for s in sizes:
        offsets.append(off)
        off += s
    k = off
    k_pad = -(-k // 128) * 128                     # 128 (fills one MXU contraction tile)
    d_pad = -(-d_model // 128) * 128               # lane-dense output

    table = jnp.concatenate([_fixed_table(s, d_model) for s in sizes], axis=0)
    table = jnp.pad(table, ((0, k_pad - k), (0, d_pad - d_model)))

    n_rows = B * L
    xr = x.reshape(n_rows, C)
    if xr.dtype != jnp.float32:
        xr = xr.astype(jnp.float32)
    tile = _pick_tile(n_rows)
    n_pad_rows = -(-n_rows // tile) * tile
    if n_pad_rows != n_rows:
        xr = jnp.pad(xr, ((0, n_pad_rows - n_rows), (0, 0)))

    kernel = functools.partial(
        _temporal_kernel, field_offsets=tuple(offsets), k_pad=k_pad
    )

    out = pl.pallas_call(
        kernel,
        out_shape=jax.ShapeDtypeStruct((n_pad_rows, d_pad), jnp.float32),
        grid=(n_pad_rows // tile,),
        in_specs=[
            pl.BlockSpec((tile, C), lambda i: (i, 0)),
            pl.BlockSpec((k_pad, d_pad), lambda i: (0, 0)),   # resident table
        ],
        out_specs=pl.BlockSpec((tile, d_pad), lambda i: (i, 0)),
        compiler_params=pltpu.CompilerParams(
            dimension_semantics=("parallel",)
        ),
    )(xr, table)

    return out[:n_rows, :d_model].reshape(B, L, d_model)


# ----------------------- pure-JAX reference (PyTorch mirror) -----------------------

def _reference(x, d_model, freq="h"):
    xi = x.astype(jnp.int32)
    out = (
        _fixed_table(24, d_model)[xi[:, :, 3]]
        + _fixed_table(7, d_model)[xi[:, :, 2]]
        + _fixed_table(32, d_model)[xi[:, :, 1]]
        + _fixed_table(13, d_model)[xi[:, :, 0]]
    )
    if freq == "t":
        out = out + _fixed_table(4, d_model)[xi[:, :, 4]]
    return out


if __name__ == "__main__":
    B, L, D = 2, 8, 32
    key = jax.random.PRNGKey(0)
    ks = jax.random.split(key, 5)
    month = jax.random.randint(ks[0], (B, L), 0, 13)
    day = jax.random.randint(ks[1], (B, L), 0, 32)
    weekday = jax.random.randint(ks[2], (B, L), 0, 7)
    hour = jax.random.randint(ks[3], (B, L), 0, 24)
    minute = jax.random.randint(ks[4], (B, L), 0, 4)
    x = jnp.stack([month, day, weekday, hour, minute], axis=-1).astype(jnp.float32)

    out_h = temporal_embedding(x, d_model=D, freq="h")
    out_t = temporal_embedding(x, d_model=D, freq="t")
    out_h, out_t = jax.block_until_ready((out_h, out_t))

    ref_h = _reference(x, D, "h")
    ref_t = _reference(x, D, "t")

    assert out_h.shape == (B, L, D) and out_t.shape == (B, L, D)
    assert out_h.dtype == jnp.float32
    assert jnp.allclose(out_h, ref_h, atol=1e-4, rtol=1e-4)
    assert jnp.allclose(out_t, ref_t, atol=1e-4, rtol=1e-4)

    print("KERNEL_OK")
</pallas_src>

<mosaic_0001>
module attributes {stable_mosaic.version = 11 : i64} {
  func.func @_temporal_kernel(%arg0: i32, %arg1: memref<16x5xf32, #tpu.memory_space<vmem>>, %arg2: memref<128x128xf32, #tpu.memory_space<vmem>>, %arg3: memref<16x128xf32, #tpu.memory_space<vmem>>) attributes {dimension_semantics = [#tpu.dimension_semantics<parallel>], iteration_bounds = array<i64: 1>, scalar_prefetch = 0 : i64, scratch_operands = 0 : i64, tpu.core_type = #tpu.core_type<tc>, window_params = [{transform_indices = @transform_0, window_bounds = array<i64: 16, 5>}, {pipeline_mode = #tpu.pipeline_mode<synchronous>, transform_indices = @transform_1, window_bounds = array<i64: 128, 128>}, {transform_indices = @transform_2, window_bounds = array<i64: 16, 128>}]} {
    %c0 = arith.constant 0 : index
    %c0_0 = arith.constant 0 : index
    %0 = vector.load %arg1[%c0, %c0_0] : memref<16x5xf32, #tpu.memory_space<vmem>>, vector<16x5xf32>
    %1 = arith.fptosi %0 : vector<16x5xf32> to vector<16x5xi32>
    %2 = tpu.iota {dimensions = array<i32: 1>} : vector<16x128xi32>
    %3 = vector.extract_strided_slice %1 {offsets = [0, 0], sizes = [16, 1], strides = [1, 1]} : vector<16x5xi32> to vector<16x1xi32>
    %c0_i32 = arith.constant 0 : i32
    %4 = vector.broadcast %c0_i32 : i32 to vector<16x1xi32>
    %5 = arith.addi %3, %4 : vector<16x1xi32>
    %6 = vector.broadcast %5 : vector<16x1xi32> to vector<16x128xi32>
    %7 = arith.cmpi eq, %2, %6 : vector<16x128xi32>
    %8 = vector.extract_strided_slice %1 {offsets = [0, 1], sizes = [16, 1], strides = [1, 1]} : vector<16x5xi32> to vector<16x1xi32>
    %c13_i32 = arith.constant 13 : i32
    %9 = vector.broadcast %c13_i32 : i32 to vector<16x1xi32>
    %10 = arith.addi %8, %9 : vector<16x1xi32>
    %11 = vector.broadcast %10 : vector<16x1xi32> to vector<16x128xi32>
    %12 = arith.cmpi eq, %2, %11 : vector<16x128xi32>
    %13 = arith.ori %7, %12 : vector<16x128xi1>
    %14 = vector.extract_strided_slice %1 {offsets = [0, 2], sizes = [16, 1], strides = [1, 1]} : vector<16x5xi32> to vector<16x1xi32>
    %c45_i32 = arith.constant 45 : i32
    %15 = vector.broadcast %c45_i32 : i32 to vector<16x1xi32>
    %16 = arith.addi %14, %15 : vector<16x1xi32>
    %17 = vector.broadcast %16 : vector<16x1xi32> to vector<16x128xi32>
    %18 = arith.cmpi eq, %2, %17 : vector<16x128xi32>
    %19 = arith.ori %13, %18 : vector<16x128xi1>
    %20 = vector.extract_strided_slice %1 {offsets = [0, 3], sizes = [16, 1], strides = [1, 1]} : vector<16x5xi32> to vector<16x1xi32>
    %c52_i32 = arith.constant 52 : i32
    %21 = vector.broadcast %c52_i32 : i32 to vector<16x1xi32>
    %22 = arith.addi %20, %21 : vector<16x1xi32>
    %23 = vector.broadcast %22 : vector<16x1xi32> to vector<16x128xi32>
    %24 = arith.cmpi eq, %2, %23 : vector<16x128xi32>
    %25 = arith.ori %19, %24 : vector<16x128xi1>
    %26 = arith.extui %25 : vector<16x128xi1> to vector<16x128xi32>
    %27 = arith.sitofp %26 : vector<16x128xi32> to vector<16x128xf32>
    %c0_1 = arith.constant 0 : index
    %c0_2 = arith.constant 0 : index
    %28 = vector.load %arg2[%c0_1, %c0_2] : memref<128x128xf32, #tpu.memory_space<vmem>>, vector<128x128xf32>
    %cst = arith.constant dense<0.000000e+00> : vector<16x128xf32>
    %29 = tpu.matmul %27, %28, %cst {dimension_numbers = #tpu.dot_dimension_numbers<[1], [0], [0], [1], [0, 0, 1, 1], [], []>, precision = #tpu.contract_precision<fp32>} : vector<16x128xf32>, vector<128x128xf32>, vector<16x128xf32> -> vector<16x128xf32>
    %c0_3 = arith.constant 0 : index
    %c0_4 = arith.constant 0 : index
    %30 = vector.load %arg3[%c0_3, %c0_4] : memref<16x128xf32, #tpu.memory_space<vmem>>, vector<16x128xf32>
    tpu.vector_store %arg3[%c0_3, %c0_4], %29 {strides = array<i32>} : memref<16x128xf32, #tpu.memory_space<vmem>>, vector<16x128xf32>,
    return
  }
  func.func @transform_0(%arg0: i32) -> (i32, i32) {
    %c0_i32 = arith.constant 0 : i32
    %c0_i32_0 = arith.constant 0 : i32
    return %arg0, %c0_i32 : i32, i32
  }
  func.func @transform_1(%arg0: i32) -> (i32, i32) {
    %c0_i32 = arith.constant 0 : i32
    %c0_i32_0 = arith.constant 0 : i32
    %c0_i32_1 = arith.constant 0 : i32
    return %c0_i32, %c0_i32_0 : i32, i32
  }
  func.func @transform_2(%arg0: i32) -> (i32, i32) {
    %c0_i32 = arith.constant 0 : i32
    %c0_i32_0 = arith.constant 0 : i32
    return %arg0, %c0_i32 : i32, i32
  }
}

</mosaic_0001>

<llo_original>
// kernel: tpu_custom_call.1
$region0: #{tpu_custom_call.1}
  #allocation0 [shape = 'u32[]', space=smem, size = 0x4, offset = 0x4, fixed_abs, tag = 'smem constant byte address 0x4 - core index']
  #allocation1 [shape = 'u32[72,128]{1,0:T(1,128)}', space=vmem, size = 0x9000, scoped, tag = 'internal scratch']
  %s0 = inlined_call_operand.vmem [shape: f32[16,5], index: 0, kind: input, shape index: {}]
  %s1 = inlined_call_operand.hbm [shape: f32[128,128], index: 1, kind: input, shape index: {}]
  %s2 = inlined_call_operand.hbm [shape: f32[16,128], index: 2, kind: output, shape index: {}]
  %s3 = sld [smem:[#allocation0]]
  $region22: #{tpu_custom_call.1} parent=0
    _
  %s5 = ssub.s32 1, %s3
  %s6 = scalar_select 0, %s5, %s3
  $region1: #{tpu_custom_call.1} parent=0
    #allocation2 [shape = 'u8[65536]{0}', space=vmem, size = 0x10000, scoped, tag = 'input window, operand 1, single buffered']
    #allocation3 [shape = 's32[1]{0}', space=sflag, size = 0x4, scoped, tag = 'scoped memory for tpu_custom_call.1']
    #allocation4 [shape = 's32[1]{0}', space=sflag, size = 0x4, scoped, tag = 'scoped memory for tpu_custom_call.1']
    #allocation5 [shape = 'u8[8192]{0}', space=vmem, size = 0x2000, scoped, tag = 'output window, operand 0, single buffered']
    %7 = vsyncpa [#allocation3], 0
    %8 = vsyncpa [#allocation4], 0
    // Predicated region
    $region2: #{tpu_custom_call.1} parent=1 // pred_check
      _
    $region3: #{tpu_custom_call.1} parent=1 // pred_check_branch
      %10 = sbr.rel (0) target = $region5
    $region4: #{tpu_custom_call.1} parent=1 // pred_region
      _
    $region5: #{tpu_custom_call.1} parent=1 // pred_fallthru
      _
    // Predicated region
    $region6: #{tpu_custom_call.1} parent=1 // pred_check
      _
    $region7: #{tpu_custom_call.1} parent=1 // pred_check_branch
      %12 = sbr.rel (0) target = $region9
    $region8: #{tpu_custom_call.1} parent=1 // pred_region
      %14 = vsyncadd [#allocation3], 0
      %s15 = sshll.u32 %s1, 4
      %s16 = int_to_ptr.hbm [resolvable:$true] %s15
      %s17 = sshll.u32 [#allocation2], 4
      %s18 = int_to_ptr.vmem [resolvable:$true] %s17
      %23 = dma.hbm_to_vmem [thread:$0]  %s16, 2048, %s18, [#allocation3], 128, 128, 8
    $region9: #{tpu_custom_call.1} parent=1 // pred_fallthru
      _
    // Predicated region
    $region10: #{tpu_custom_call.1} parent=1 // pred_check
      _
    $region11: #{tpu_custom_call.1} parent=1 // pred_check_branch
      %25 = sbr.rel (0) target = $region13
    $region12: #{tpu_custom_call.1} parent=1 // pred_region
      %27 = dma.done [#allocation3], 2048
    $region13: #{tpu_custom_call.1} parent=1 // pred_fallthru
      _
    %v28 = vld [vmem:[%s0] sm:$0xff]
    %v29 = vld [vmem:[%s0 + $0x8] sm:$0xff]
    %v30 = vcvt.f32.s32.to.zero.pseudo %v28
    %v31 = vcvt.f32.s32.to.zero.pseudo %v29
    %v32 = vlaneseq
    %v33 = vand.u32 %v32, 127
    %34 = vset.pattern.permute.xlu0 0
    %35 = vperm.xlu0 %34, %v30
    %v36 = vpop.permute.xlu0 %35
    %37 = vset.pattern.permute.xlu0 0
    %38 = vperm.xlu0 %37, %v31
    %v39 = vpop.permute.xlu0 %38
    %vm40 = vcmp.eq.s32.totalorder %v33, %v36
    %vm41 = vcmp.eq.s32.totalorder %v33, %v39
    %v42 = vadd.s32 %v30, 13
    %v43 = vadd.s32 %v31, 13
    %44 = vset.pattern.permute.xlu0 1
    %45 = vperm.xlu0 %44, %v42
    %v46 = vpop.permute.xlu0 %45
    %47 = vset.pattern.permute.xlu0 1
    %48 = vperm.xlu0 %47, %v43
    %v49 = vpop.permute.xlu0 %48
    %vm50 = vcmp.eq.s32.totalorder %v33, %v46
    %vm51 = vcmp.eq.s32.totalorder %v33, %v49
    %vm52 = vmor %vm40, %vm50
    %vm53 = vmor %vm41, %vm51
    %v54 = vadd.s32 %v30, 45
    %v55 = vadd.s32 %v31, 45
    %56 = vset.pattern.permute.xlu0 2
    %57 = vperm.xlu0 %56, %v54
    %v58 = vpop.permute.xlu0 %57
    %59 = vset.pattern.permute.xlu0 2
    %60 = vperm.xlu0 %59, %v55
    %v61 = vpop.permute.xlu0 %60
    %vm62 = vcmp.eq.s32.totalorder %v33, %v58
    %vm63 = vcmp.eq.s32.totalorder %v33, %v61
    %vm64 = vmor %vm52, %vm62
    %vm65 = vmor %vm53, %vm63
    %v66 = vadd.s32 %v30, 52
    %v67 = vadd.s32 %v31, 52
    %68 = vset.pattern.permute.xlu0 3
    %69 = vperm.xlu0 %68, %v66
    %v70 = vpop.permute.xlu0 %69
    %71 = vset.pattern.permute.xlu0 3
    %72 = vperm.xlu0 %71, %v67
    %v73 = vpop.permute.xlu0 %72
    %vm74 = vcmp.eq.s32.totalorder %v33, %v70
    %vm75 = vcmp.eq.s32.totalorder %v33, %v73
    %vm76 = vmor %vm64, %vm74
    %vm77 = vmor %vm65, %vm75
    %v78 = vsel %vm76, 1, 0
    %v79 = vsel %vm77, 1, 0
    %v80 = vcvt.s32.f32 %v78
    %v81 = vcvt.s32.f32 %v79
    %v82 = vld [vmem:[#allocation2] sm:$0xff]
    %v83 = vld [vmem:[#allocation2 + $0x8] sm:$0xff]
    %v84 = vld [vmem:[#allocation2 + $0x10] sm:$0xff]
    %v85 = vld [vmem:[#allocation2 + $0x18] sm:$0xff]
    %v86 = vld [vmem:[#allocation2 + $0x20] sm:$0xff]
    %v87 = vld [vmem:[#allocation2 + $0x28] sm:$0xff]
    %v88 = vld [vmem:[#allocation2 + $0x30] sm:$0xff]
    %v89 = vld [vmem:[#allocation2 + $0x38] sm:$0xff]
    %v90 = vld [vmem:[#allocation2 + $0x40] sm:$0xff]
    %v91 = vld [vmem:[#allocation2 + $0x48] sm:$0xff]
    %v92 = vld [vmem:[#allocation2 + $0x50] sm:$0xff]
    %v93 = vld [vmem:[#allocation2 + $0x58] sm:$0xff]
    %v94 = vld [vmem:[#allocation2 + $0x60] sm:$0xff]
    %v95 = vld [vmem:[#allocation2 + $0x68] sm:$0xff]
    %v96 = vld [vmem:[#allocation2 + $0x70] sm:$0xff]
    %v97 = vld [vmem:[#allocation2 + $0x78] sm:$0xff]
    %v98 = vand.u32 %v97, 4294901760
    %99 = vmatpush.msra.mxu0 %v98
    %v100 = vand.u32 %v96, 4294901760
    %101 = vmatpush.msra.mxu0 %v100
    %v102 = vand.u32 %v95, 4294901760
    %103 = vmatpush.msra.mxu0 %v102
    %v104 = vand.u32 %v94, 4294901760
    %105 = vmatpush.msra.mxu0 %v104
    %v106 = vand.u32 %v93, 4294901760
    %107 = vmatpush.msra.mxu0 %v106
    %v108 = vand.u32 %v92, 4294901760
    %109 = vmatpush.msra.mxu0 %v108
    %v110 = vand.u32 %v91, 4294901760
    %111 = vmatpush.msra.mxu0 %v110
    %v112 = vand.u32 %v90, 4294901760
    %113 = vmatpush.msra.mxu0 %v112
    %v114 = vand.u32 %v89, 4294901760
    %115 = vmatpush.msra.mxu0 %v114
    %v116 = vand.u32 %v88, 4294901760
    %117 = vmatpush.msra.mxu0 %v116
    %v118 = vand.u32 %v87, 4294901760
    %119 = vmatpush.msra.mxu0 %v118
    %v120 = vand.u32 %v86, 4294901760
    %121 = vmatpush.msra.mxu0 %v120
    %v122 = vand.u32 %v85, 4294901760
    %123 = vmatpush.msra.mxu0 %v122
    %v124 = vand.u32 %v84, 4294901760
    %125 = vmatpush.msra.mxu0 %v124
    %v126 = vand.u32 %v83, 4294901760
    %127 = vmatpush.msra.mxu0 %v126
    %v128 = vand.u32 %v82, 4294901760
    %129 = vmatpush.msra.mxu0 %v128
    %v130 = vand.u32 %v80, 4294901760
    %v131 = vsub.f32 %v80, %v130
    %v132 = vand.u32 %v131, 4294901760
    %v133 = vsub.f32 %v131, %v132
    %v134 = vand.u32 %v133, 4294901760
    %135 = vmatmul.f32.gmra.mxu0 %v134
    %v136 = vpop.f32.mrf.mxu0
    %v137 = vadd.f32 0.0, %v136
    %v138 = vand.u32 %v81, 4294901760
    %v139 = vsub.f32 %v81, %v138
    %v140 = vand.u32 %v139, 4294901760
    %v141 = vsub.f32 %v139, %v140
    %v142 = vand.u32 %v141, 4294901760
    %143 = vmatmul.f32.gmra.mxu0 %v142
    %v144 = vpop.f32.mrf.mxu0
    %v145 = vadd.f32 0.0, %v144
    %146 = vdwg.mxu0
    %v147 = vand.u32 %v97, 4294901760
    %v148 = vsub.f32 %v97, %v147
    %v149 = vand.u32 %v148, 4294901760
    %v150 = vsub.f32 %v148, %v149
    %v151 = vand.u32 %v150, 4294901760
    %152 = vmatpush.msra.mxu0 %v151
    %v153 = vand.u32 %v96, 4294901760
    %v154 = vsub.f32 %v96, %v153
    %v155 = vand.u32 %v154, 4294901760
    %v156 = vsub.f32 %v154, %v155
    %v157 = vand.u32 %v156, 4294901760
    %158 = vmatpush.msra.mxu0 %v157
    %v159 = vand.u32 %v95, 4294901760
    %v160 = vsub.f32 %v95, %v159
    %v161 = vand.u32 %v160, 4294901760
    %v162 = vsub.f32 %v160, %v161
    %v163 = vand.u32 %v162, 4294901760
    %164 = vmatpush.msra.mxu0 %v163
    %v165 = vand.u32 %v94, 4294901760
    %v166 = vsub.f32 %v94, %v165
    %v167 = vand.u32 %v166, 4294901760
    %v168 = vsub.f32 %v166, %v167
    %v169 = vand.u32 %v168, 4294901760
    %170 = vmatpush.msra.mxu0 %v169
    %v171 = vand.u32 %v93, 4294901760
    %v172 = vsub.f32 %v93, %v171
    %v173 = vand.u32 %v172, 4294901760
    %v174 = vsub.f32 %v172, %v173
    %v175 = vand.u32 %v174, 4294901760
    %176 = vmatpush.msra.mxu0 %v175
    %v177 = vand.u32 %v92, 4294901760
    %v178 = vsub.f32 %v92, %v177
    %v179 = vand.u32 %v178, 4294901760
    %v180 = vsub.f32 %v178, %v179
    %v181 = vand.u32 %v180, 4294901760
    %182 = vmatpush.msra.mxu0 %v181
    %v183 = vand.u32 %v91, 4294901760
    %v184 = vsub.f32 %v91, %v183
    %v185 = vand.u32 %v184, 4294901760
    %v186 = vsub.f32 %v184, %v185
    %v187 = vand.u32 %v186, 4294901760
    %188 = vmatpush.msra.mxu0 %v187
    %v189 = vand.u32 %v90, 4294901760
    %v190 = vsub.f32 %v90, %v189
    %v191 = vand.u32 %v190, 4294901760
    %v192 = vsub.f32 %v190, %v191
    %v193 = vand.u32 %v192, 4294901760
    %194 = vmatpush.msra.mxu0 %v193
    %v195 = vand.u32 %v89, 4294901760
    %v196 = vsub.f32 %v89, %v195
    %v197 = vand.u32 %v196, 4294901760
    %v198 = vsub.f32 %v196, %v197
    %v199 = vand.u32 %v198, 4294901760
    %200 = vmatpush.msra.mxu0 %v199
    %v201 = vand.u32 %v88, 4294901760
    %v202 = vsub.f32 %v88, %v201
    %v203 = vand.u32 %v202, 4294901760
    %v204 = vsub.f32 %v202, %v203
    %v205 = vand.u32 %v204, 4294901760
    %206 = vmatpush.msra.mxu0 %v205
    %v207 = vand.u32 %v87, 4294901760
    %v208 = vsub.f32 %v87, %v207
    %v209 = vand.u32 %v208, 4294901760
    %v210 = vsub.f32 %v208, %v209
    %v211 = vand.u32 %v210, 4294901760
    %212 = vmatpush.msra.mxu0 %v211
    %v213 = vand.u32 %v86, 4294901760
    %v214 = vsub.f32 %v86, %v213
    %v215 = vand.u32 %v214, 4294901760
    %v216 = vsub.f32 %v214, %v215
    %v217 = vand.u32 %v216, 4294901760
    %218 = vmatpush.msra.mxu0 %v217
    %v219 = vand.u32 %v85, 4294901760
    %v220 = vsub.f32 %v85, %v219
    %v221 = vand.u32 %v220, 4294901760
    %v222 = vsub.f32 %v220, %v221
    %v223 = vand.u32 %v222, 4294901760
    %224 = vmatpush.msra.mxu0 %v223
    %v225 = vand.u32 %v84, 4294901760
    %v226 = vsub.f32 %v84, %v225
    %v227 = vand.u32 %v226, 4294901760
    %v228 = vsub.f32 %v226, %v227
    %v229 = vand.u32 %v228, 4294901760
    %230 = vmatpush.msra.mxu0 %v229
    %v231 = vand.u32 %v83, 4294901760
    %v232 = vsub.f32 %v83, %v231
    %v233 = vand.u32 %v232, 4294901760
    %v234 = vsub.f32 %v232, %v233
    %v235 = vand.u32 %v234, 4294901760
    %236 = vmatpush.msra.mxu0 %v235
    %v237 = vand.u32 %v82, 4294901760
    %v238 = vsub.f32 %v82, %v237
    %v239 = vand.u32 %v238, 4294901760
    %v240 = vsub.f32 %v238, %v239
    %v241 = vand.u32 %v240, 4294901760
    %242 = vmatpush.msra.mxu0 %v241
    %v243 = vand.u32 %v80, 4294901760
    %244 = vmatmul.f32.gmra.mxu0 %v243
    %v245 = vpop.f32.mrf.mxu0
    %v246 = vadd.f32 %v137, %v245
    %v247 = vand.u32 %v81, 4294901760
    %248 = vmatmul.f32.gmra.mxu0 %v247
    %v249 = vpop.f32.mrf.mxu0
    %v250 = vadd.f32 %v145, %v249
    %251 = vdwg.mxu0
    %v252 = vand.u32 %v97, 4294901760
    %v253 = vsub.f32 %v97, %v252
    %254 = vmatpush.msra.mxu0 %v253
    %v255 = vand.u32 %v96, 4294901760
    %v256 = vsub.f32 %v96, %v255
    %257 = vmatpush.msra.mxu0 %v256
    %v258 = vand.u32 %v95, 4294901760
    %v259 = vsub.f32 %v95, %v258
    %260 = vmatpush.msra.mxu0 %v259
    %v261 = vand.u32 %v94, 4294901760
    %v262 = vsub.f32 %v94, %v261
    %263 = vmatpush.msra.mxu0 %v262
    %v264 = vand.u32 %v93, 4294901760
    %v265 = vsub.f32 %v93, %v264
    %266 = vmatpush.msra.mxu0 %v265
    %v267 = vand.u32 %v92, 4294901760
    %v268 = vsub.f32 %v92, %v267
    %269 = vmatpush.msra.mxu0 %v268
    %v270 = vand.u32 %v91, 4294901760
    %v271 = vsub.f32 %v91, %v270
    %272 = vmatpush.msra.mxu0 %v271
    %v273 = vand.u32 %v90, 4294901760
    %v274 = vsub.f32 %v90, %v273
    %275 = vmatpush.msra.mxu0 %v274
    %v276 = vand.u32 %v89, 4294901760
    %v277 = vsub.f32 %v89, %v276
    %278 = vmatpush.msra.mxu0 %v277
    %v279 = vand.u32 %v88, 4294901760
    %v280 = vsub.f32 %v88, %v279
    %281 = vmatpush.msra.mxu0 %v280
    %v282 = vand.u32 %v87, 4294901760
    %v283 = vsub.f32 %v87, %v282
    %284 = vmatpush.msra.mxu0 %v283
    %v285 = vand.u32 %v86, 4294901760
    %v286 = vsub.f32 %v86, %v285
    %287 = vmatpush.msra.mxu0 %v286
    %v288 = vand.u32 %v85, 4294901760
    %v289 = vsub.f32 %v85, %v288
    %290 = vmatpush.msra.mxu0 %v289
    %v291 = vand.u32 %v84, 4294901760
    %v292 = vsub.f32 %v84, %v291
    %293 = vmatpush.msra.mxu0 %v292
    %v294 = vand.u32 %v83, 4294901760
    %v295 = vsub.f32 %v83, %v294
    %296 = vmatpush.msra.mxu0 %v295
    %v297 = vand.u32 %v82, 4294901760
    %v298 = vsub.f32 %v82, %v297
    %299 = vmatpush.msra.mxu0 %v298
    %v300 = vand.u32 %v80, 4294901760
    %v301 = vsub.f32 %v80, %v300
    %302 = vmatmul.f32.gmra.mxu0 %v301
    %v303 = vpop.f32.mrf.mxu0
    %v304 = vadd.f32 %v246, %v303
    %v305 = vand.u32 %v81, 4294901760
    %v306 = vsub.f32 %v81, %v305
    %307 = vmatmul.f32.gmra.mxu0 %v306
    %v308 = vpop.f32.mrf.mxu0
    %v309 = vadd.f32 %v250, %v308
    %310 = vdwg.mxu0
    %v311 = vand.u32 %v97, 4294901760
    %312 = vmatpush.msra.mxu0 %v311
    %v313 = vand.u32 %v96, 4294901760
    %314 = vmatpush.msra.mxu0 %v313
    %v315 = vand.u32 %v95, 4294901760
    %316 = vmatpush.msra.mxu0 %v315
    %v317 = vand.u32 %v94, 4294901760
    %318 = vmatpush.msra.mxu0 %v317
    %v319 = vand.u32 %v93, 4294901760
    %320 = vmatpush.msra.mxu0 %v319
    %v321 = vand.u32 %v92, 4294901760
    %322 = vmatpush.msra.mxu0 %v321
    %v323 = vand.u32 %v91, 4294901760
    %324 = vmatpush.msra.mxu0 %v323
    %v325 = vand.u32 %v90, 4294901760
    %326 = vmatpush.msra.mxu0 %v325
    %v327 = vand.u32 %v89, 4294901760
    %328 = vmatpush.msra.mxu0 %v327
    %v329 = vand.u32 %v88, 4294901760
    %330 = vmatpush.msra.mxu0 %v329
    %v331 = vand.u32 %v87, 4294901760
    %332 = vmatpush.msra.mxu0 %v331
    %v333 = vand.u32 %v86, 4294901760
    %334 = vmatpush.msra.mxu0 %v333
    %v335 = vand.u32 %v85, 4294901760
    %336 = vmatpush.msra.mxu0 %v335
    %v337 = vand.u32 %v84, 4294901760
    %338 = vmatpush.msra.mxu0 %v337
    %v339 = vand.u32 %v83, 4294901760
    %340 = vmatpush.msra.mxu0 %v339
    %v341 = vand.u32 %v82, 4294901760
    %342 = vmatpush.msra.mxu0 %v341
    %v343 = vand.u32 %v80, 4294901760
    %v344 = vsub.f32 %v80, %v343
    %v345 = vand.u32 %v344, 4294901760
    %346 = vmatmul.f32.gmra.mxu0 %v345
    %v347 = vpop.f32.mrf.mxu0
    %v348 = vadd.f32 %v304, %v347
    %v349 = vand.u32 %v81, 4294901760
    %v350 = vsub.f32 %v81, %v349
    %v351 = vand.u32 %v350, 4294901760
    %352 = vmatmul.f32.gmra.mxu0 %v351
    %v353 = vpop.f32.mrf.mxu0
    %v354 = vadd.f32 %v309, %v353
    %355 = vdwg.mxu0
    %v356 = vand.u32 %v97, 4294901760
    %v357 = vsub.f32 %v97, %v356
    %v358 = vand.u32 %v357, 4294901760
    %359 = vmatpush.msra.mxu0 %v358
    %v360 = vand.u32 %v96, 4294901760
    %v361 = vsub.f32 %v96, %v360
    %v362 = vand.u32 %v361, 4294901760
    %363 = vmatpush.msra.mxu0 %v362
    %v364 = vand.u32 %v95, 4294901760
    %v365 = vsub.f32 %v95, %v364
    %v366 = vand.u32 %v365, 4294901760
    %367 = vmatpush.msra.mxu0 %v366
    %v368 = vand.u32 %v94, 4294901760
    %v369 = vsub.f32 %v94, %v368
    %v370 = vand.u32 %v369, 4294901760
    %371 = vmatpush.msra.mxu0 %v370
    %v372 = vand.u32 %v93, 4294901760
    %v373 = vsub.f32 %v93, %v372
    %v374 = vand.u32 %v373, 4294901760
    %375 = vmatpush.msra.mxu0 %v374
    %v376 = vand.u32 %v92, 4294901760
    %v377 = vsub.f32 %v92, %v376
    %v378 = vand.u32 %v377, 4294901760
    %379 = vmatpush.msra.mxu0 %v378
    %v380 = vand.u32 %v91, 4294901760
    %v381 = vsub.f32 %v91, %v380
    %v382 = vand.u32 %v381, 4294901760
    %383 = vmatpush.msra.mxu0 %v382
    %v384 = vand.u32 %v90, 4294901760
    %v385 = vsub.f32 %v90, %v384
    %v386 = vand.u32 %v385, 4294901760
    %387 = vmatpush.msra.mxu0 %v386
    %v388 = vand.u32 %v89, 4294901760
    %v389 = vsub.f32 %v89, %v388
    %v390 = vand.u32 %v389, 4294901760
    %391 = vmatpush.msra.mxu0 %v390
    %v392 = vand.u32 %v88, 4294901760
    %v393 = vsub.f32 %v88, %v392
    %v394 = vand.u32 %v393, 4294901760
    %395 = vmatpush.msra.mxu0 %v394
    %v396 = vand.u32 %v87, 4294901760
    %v397 = vsub.f32 %v87, %v396
    %v398 = vand.u32 %v397, 4294901760
    %399 = vmatpush.msra.mxu0 %v398
    %v400 = vand.u32 %v86, 4294901760
    %v401 = vsub.f32 %v86, %v400
    %v402 = vand.u32 %v401, 4294901760
    %403 = vmatpush.msra.mxu0 %v402
    %v404 = vand.u32 %v85, 4294901760
    %v405 = vsub.f32 %v85, %v404
    %v406 = vand.u32 %v405, 4294901760
    %407 = vmatpush.msra.mxu0 %v406
    %v408 = vand.u32 %v84, 4294901760
    %v409 = vsub.f32 %v84, %v408
    %v410 = vand.u32 %v409, 4294901760
    %411 = vmatpush.msra.mxu0 %v410
    %v412 = vand.u32 %v83, 4294901760
    %v413 = vsub.f32 %v83, %v412
    %v414 = vand.u32 %v413, 4294901760
    %415 = vmatpush.msra.mxu0 %v414
    %v416 = vand.u32 %v82, 4294901760
    %v417 = vsub.f32 %v82, %v416
    %v418 = vand.u32 %v417, 4294901760
    %419 = vmatpush.msra.mxu0 %v418
    %v420 = vand.u32 %v80, 4294901760
    %421 = vmatmul.f32.gmra.mxu0 %v420
    %v422 = vpop.f32.mrf.mxu0
    %v423 = vadd.f32 %v348, %v422
    %v424 = vand.u32 %v81, 4294901760
    %425 = vmatmul.f32.gmra.mxu0 %v424
    %v426 = vpop.f32.mrf.mxu0
    %v427 = vadd.f32 %v354, %v426
    %428 = vdwg.mxu0
    %v429 = vand.u32 %v97, 4294901760
    %430 = vmatpush.msra.mxu0 %v429
    %v431 = vand.u32 %v96, 4294901760
    %432 = vmatpush.msra.mxu0 %v431
    %v433 = vand.u32 %v95, 4294901760
    %434 = vmatpush.msra.mxu0 %v433
    %v435 = vand.u32 %v94, 4294901760
    %436 = vmatpush.msra.mxu0 %v435
    %v437 = vand.u32 %v93, 4294901760
    %438 = vmatpush.msra.mxu0 %v437
    %v439 = vand.u32 %v92, 4294901760
    %440 = vmatpush.msra.mxu0 %v439
    %v441 = vand.u32 %v91, 4294901760
    %442 = vmatpush.msra.mxu0 %v441
    %v443 = vand.u32 %v90, 4294901760
    %444 = vmatpush.msra.mxu0 %v443
    %v445 = vand.u32 %v89, 4294901760
    %446 = vmatpush.msra.mxu0 %v445
    %v447 = vand.u32 %v88, 4294901760
    %448 = vmatpush.msra.mxu0 %v447
    %v449 = vand.u32 %v87, 4294901760
    %450 = vmatpush.msra.mxu0 %v449
    %v451 = vand.u32 %v86, 4294901760
    %452 = vmatpush.msra.mxu0 %v451
    %v453 = vand.u32 %v85, 4294901760
    %454 = vmatpush.msra.mxu0 %v453
    %v455 = vand.u32 %v84, 4294901760
    %456 = vmatpush.msra.mxu0 %v455
    %v457 = vand.u32 %v83, 4294901760
    %458 = vmatpush.msra.mxu0 %v457
    %v459 = vand.u32 %v82, 4294901760
    %460 = vmatpush.msra.mxu0 %v459
    %v461 = vand.u32 %v80, 4294901760
    %462 = vmatmul.f32.gmra.mxu0 %v461
    %v463 = vpop.f32.mrf.mxu0
    %v464 = vadd.f32 %v423, %v463
    %v465 = vand.u32 %v81, 4294901760
    %466 = vmatmul.f32.gmra.mxu0 %v465
    %v467 = vpop.f32.mrf.mxu0
    %v468 = vadd.f32 %v427, %v467
    %469 = vdwg.mxu0
    %470 = vst [vmem:[#allocation5] sm:$0xff] %v464
    %471 = vst [vmem:[#allocation5 + $0x8] sm:$0xff] %v468
    // Predicated region
    $region14: #{tpu_custom_call.1} parent=1 // pred_check
      _
    $region15: #{tpu_custom_call.1} parent=1 // pred_check_branch
      %473 = sbr.rel (0) target = $region17
    $region16: #{tpu_custom_call.1} parent=1 // pred_region
      %475 = vsyncadd [#allocation4], 0
      %s476 = sshll.u32 [#allocation5], 4
      %s477 = int_to_ptr.vmem [resolvable:$true] %s476
      %s478 = sshll.u32 %s2, 4
      %s479 = int_to_ptr.hbm [resolvable:$true] %s478
      %484 = dma.vmem_to_hbm [thread:$0]  %s477, 256, %s479, [#allocation4], 128, 128, 8
    $region17: #{tpu_custom_call.1} parent=1 // pred_fallthru
      _
    // Predicated region
    $region18: #{tpu_custom_call.1} parent=1 // pred_check
      _
    $region19: #{tpu_custom_call.1} parent=1 // pred_check_branch
      %486 = sbr.rel (0) target = $region21
    $region20: #{tpu_custom_call.1} parent=1 // pred_region
      %488 = dma.done [#allocation4], 256
    $region21: #{tpu_custom_call.1} parent=1 // pred_fallthru
      _
    %489 = vsyncpa [#allocation3], 1
    %490 = vsyncpa [#allocation4], 1

</llo_original>
